<compile_context>
chip_gen: v6e
topology: v6e:2x2x1
jax: 0.10.0
libtpu: 0.0.40
codegen_flags: <defaults>
</compile_context>

<pallas_src>
import math

import jax
import jax.numpy as jnp
from jax import lax
from jax.experimental import pallas as pl
from jax.experimental.pallas import tpu as pltpu

VOCAB = 32
HIDDEN = 32
SEQ = 8
TILE_N = 512      # texts per grid step (multiple of 128); tiny VMEM footprint


def _text_to_tensor_kernel(tok_ref, c_ref, b_ref, out_ref):
    # tok_ref: (SEQ, TILE_N) int8  | c_ref: (VOCAB, 1) f32 folded head (resident)
    # b_ref:  (1, 1) f32 in SMEM   | out_ref: (1, TILE_N) f32 (lane-dense)
    tok = tok_ref[...].astype(jnp.int32)                      # (S, TILE_N)
    s_len, tile_n = tok.shape
    v = c_ref.shape[0]

    # Bag-of-words counts with texts on lanes / vocab on sublanes.  The short
    # sequence axis is statically unrolled: pure VPU compare + add, no 3-D
    # one-hot and no per-row cross-lane reductions.
    iota_v = lax.broadcasted_iota(jnp.int32, (v, tile_n), 0)
    counts = jnp.zeros((v, tile_n), jnp.float32)
    for s in range(s_len):
        counts = counts + (tok[s:s + 1, :] == iota_v).astype(jnp.float32)

    # Folded embedding + linear head: weight counts by the per-vocab
    # coefficient and do a single cross-sublane reduce to a lane-dense row.
    weighted = counts * c_ref[...]                            # (V, TILE_N)
    out_ref[...] = jnp.sum(weighted, axis=0, keepdims=True) + b_ref[0, 0]


def _round_up(x, m):
    return ((x + m - 1) // m) * m


def text_to_tensor(token_ids, emb, w, b, reshape=True, tile_n=TILE_N):
    """Mirror of TextToTensor.forward: flatten -> model -> reshape."""
    grid_shape = token_ids.shape[:-1]
    seq = token_ids.shape[-1]
    n = math.prod(grid_shape) if grid_shape else 1
    tok_flat = token_ids.reshape(n, seq)                      # the `.flat` step

    # Fold the linear head and the 1/SEQ mean-pool into one (V, 1) coefficient.
    c = (emb.astype(jnp.float32) @ w.astype(jnp.float32)) / float(seq)

    # Lane-dense layout: texts on the lane axis, padded to a tile multiple;
    # padded columns produce garbage scores that are sliced off below.
    tile = min(tile_n, _round_up(n, 128))
    n_pad = _round_up(n, tile)
    tok_t = jnp.pad(tok_flat.T.astype(jnp.int8), ((0, 0), (0, n_pad - n)))

    out = pl.pallas_call(
        _text_to_tensor_kernel,
        out_shape=jax.ShapeDtypeStruct((1, n_pad), jnp.float32),
        grid=(n_pad // tile,),
        in_specs=[
            pl.BlockSpec((seq, tile), lambda i: (0, i)),          # token ids, pipelined
            pl.BlockSpec(memory_space=pltpu.MemorySpace.VMEM),    # folded head, resident
            pl.BlockSpec(memory_space=pltpu.MemorySpace.SMEM),    # scalar bias
        ],
        out_specs=pl.BlockSpec((1, tile), lambda i: (0, i)),
        compiler_params=pltpu.CompilerParams(
            dimension_semantics=("parallel",)),                   # 2 TCs on v7x
    )(tok_t, c, b)

    scores = out[0, :n]                                       # drop ragged-tile padding
    return scores.reshape(grid_shape) if reshape else scores


if __name__ == "__main__":
    key = jax.random.PRNGKey(0)
    k_tok, k_emb, k_w = jax.random.split(key, 3)

    G0, G1 = 2, 4  # TextTensor grid shape
    token_ids = jax.random.randint(k_tok, (G0, G1, SEQ), 0, VOCAB, dtype=jnp.int32)
    emb = jax.random.normal(k_emb, (VOCAB, HIDDEN), dtype=jnp.float32) * 0.1
    w = jax.random.normal(k_w, (HIDDEN, 1), dtype=jnp.float32) * 0.1
    b = jnp.full((1, 1), 0.25, dtype=jnp.float32)

    out = text_to_tensor(token_ids, emb, w, b, reshape=True)
    out = jax.block_until_ready(out)
    assert out.shape == (G0, G1), out.shape
    assert out.dtype == jnp.float32

    # pure-JAX reference of the same synthetic "model"
    tok_flat = token_ids.reshape(-1, SEQ)
    onehot = jax.nn.one_hot(tok_flat, VOCAB, dtype=jnp.float32)
    pooled = (onehot.sum(axis=1) @ emb) / SEQ
    ref = (pooled @ w + b[0, 0]).reshape(G0, G1)
    assert jnp.allclose(out, ref, atol=1e-5, rtol=1e-5), (out, ref)

    # TODO(synk): the original module calls an arbitrary Python text model on
    # raw strings; string handling itself has no TPU/Pallas equivalent, so the
    # model is replaced by a deterministic in-kernel embedding scorer.
    print("KERNEL_OK")
</pallas_src>

<mosaic_0001>
module attributes {stable_mosaic.version = 11 : i64} {
  func.func @_text_to_tensor_kernel(%arg0: i32, %arg1: memref<8x128xi8, #tpu.memory_space<vmem>>, %arg2: memref<32x1xf32, #tpu.memory_space<vmem>>, %arg3: memref<1x1xf32, #tpu.memory_space<smem>>, %arg4: memref<1x128xf32, #tpu.memory_space<vmem>>) attributes {dimension_semantics = [#tpu.dimension_semantics<parallel>], iteration_bounds = array<i64: 1>, scalar_prefetch = 0 : i64, scratch_operands = 0 : i64, tpu.core_type = #tpu.core_type<tc>, window_params = [{transform_indices = @transform_0, window_bounds = array<i64: 8, 128>}, {pipeline_mode = #tpu.pipeline_mode<synchronous>, transform_indices = @transform_1, window_bounds = array<i64: 32, 1>}, {transform_indices = @transform_2, window_bounds = array<i64: 1, 1>}, {transform_indices = @transform_3, window_bounds = array<i64: 1, 128>}]} {
    %c0 = arith.constant 0 : index
    %c0_0 = arith.constant 0 : index
    %0 = vector.load %arg1[%c0, %c0_0] : memref<8x128xi8, #tpu.memory_space<vmem>>, vector<8x128xi8>
    %1 = arith.extsi %0 : vector<8x128xi8> to vector<8x128xi32>
    %2 = tpu.iota {dimensions = array<i32: 0>} : vector<32x128xi32>
    %cst = arith.constant 0.000000e+00 : f32
    %3 = vector.broadcast %cst : f32 to vector<32x128xf32>
    %4 = vector.extract_strided_slice %1 {offsets = [0, 0], sizes = [1, 128], strides = [1, 1]} : vector<8x128xi32> to vector<1x128xi32>
    %5 = vector.broadcast %4 : vector<1x128xi32> to vector<32x128xi32>
    %6 = arith.cmpi eq, %5, %2 : vector<32x128xi32>
    %7 = arith.extui %6 : vector<32x128xi1> to vector<32x128xi32>
    %8 = arith.sitofp %7 : vector<32x128xi32> to vector<32x128xf32>
    %9 = arith.addf %3, %8 : vector<32x128xf32>
    %10 = vector.extract_strided_slice %1 {offsets = [1, 0], sizes = [1, 128], strides = [1, 1]} : vector<8x128xi32> to vector<1x128xi32>
    %11 = vector.broadcast %10 : vector<1x128xi32> to vector<32x128xi32>
    %12 = arith.cmpi eq, %11, %2 : vector<32x128xi32>
    %13 = arith.extui %12 : vector<32x128xi1> to vector<32x128xi32>
    %14 = arith.sitofp %13 : vector<32x128xi32> to vector<32x128xf32>
    %15 = arith.addf %9, %14 : vector<32x128xf32>
    %16 = vector.extract_strided_slice %1 {offsets = [2, 0], sizes = [1, 128], strides = [1, 1]} : vector<8x128xi32> to vector<1x128xi32>
    %17 = vector.broadcast %16 : vector<1x128xi32> to vector<32x128xi32>
    %18 = arith.cmpi eq, %17, %2 : vector<32x128xi32>
    %19 = arith.extui %18 : vector<32x128xi1> to vector<32x128xi32>
    %20 = arith.sitofp %19 : vector<32x128xi32> to vector<32x128xf32>
    %21 = arith.addf %15, %20 : vector<32x128xf32>
    %22 = vector.extract_strided_slice %1 {offsets = [3, 0], sizes = [1, 128], strides = [1, 1]} : vector<8x128xi32> to vector<1x128xi32>
    %23 = vector.broadcast %22 : vector<1x128xi32> to vector<32x128xi32>
    %24 = arith.cmpi eq, %23, %2 : vector<32x128xi32>
    %25 = arith.extui %24 : vector<32x128xi1> to vector<32x128xi32>
    %26 = arith.sitofp %25 : vector<32x128xi32> to vector<32x128xf32>
    %27 = arith.addf %21, %26 : vector<32x128xf32>
    %28 = vector.extract_strided_slice %1 {offsets = [4, 0], sizes = [1, 128], strides = [1, 1]} : vector<8x128xi32> to vector<1x128xi32>
    %29 = vector.broadcast %28 : vector<1x128xi32> to vector<32x128xi32>
    %30 = arith.cmpi eq, %29, %2 : vector<32x128xi32>
    %31 = arith.extui %30 : vector<32x128xi1> to vector<32x128xi32>
    %32 = arith.sitofp %31 : vector<32x128xi32> to vector<32x128xf32>
    %33 = arith.addf %27, %32 : vector<32x128xf32>
    %34 = vector.extract_strided_slice %1 {offsets = [5, 0], sizes = [1, 128], strides = [1, 1]} : vector<8x128xi32> to vector<1x128xi32>
    %35 = vector.broadcast %34 : vector<1x128xi32> to vector<32x128xi32>
    %36 = arith.cmpi eq, %35, %2 : vector<32x128xi32>
    %37 = arith.extui %36 : vector<32x128xi1> to vector<32x128xi32>
    %38 = arith.sitofp %37 : vector<32x128xi32> to vector<32x128xf32>
    %39 = arith.addf %33, %38 : vector<32x128xf32>
    %40 = vector.extract_strided_slice %1 {offsets = [6, 0], sizes = [1, 128], strides = [1, 1]} : vector<8x128xi32> to vector<1x128xi32>
    %41 = vector.broadcast %40 : vector<1x128xi32> to vector<32x128xi32>
    %42 = arith.cmpi eq, %41, %2 : vector<32x128xi32>
    %43 = arith.extui %42 : vector<32x128xi1> to vector<32x128xi32>
    %44 = arith.sitofp %43 : vector<32x128xi32> to vector<32x128xf32>
    %45 = arith.addf %39, %44 : vector<32x128xf32>
    %46 = vector.extract_strided_slice %1 {offsets = [7, 0], sizes = [1, 128], strides = [1, 1]} : vector<8x128xi32> to vector<1x128xi32>
    %47 = vector.broadcast %46 : vector<1x128xi32> to vector<32x128xi32>
    %48 = arith.cmpi eq, %47, %2 : vector<32x128xi32>
    %49 = arith.extui %48 : vector<32x128xi1> to vector<32x128xi32>
    %50 = arith.sitofp %49 : vector<32x128xi32> to vector<32x128xf32>
    %51 = arith.addf %45, %50 : vector<32x128xf32>
    %c0_1 = arith.constant 0 : index
    %c0_2 = arith.constant 0 : index
    %52 = vector.load %arg2[%c0_1, %c0_2] : memref<32x1xf32, #tpu.memory_space<vmem>>, vector<32x1xf32>
    %53 = vector.broadcast %52 : vector<32x1xf32> to vector<32x128xf32>
    %54 = arith.mulf %51, %53 : vector<32x128xf32>
    %cst_3 = arith.constant dense<0.000000e+00> : vector<128xf32>
    %55 = vector.multi_reduction <add>, %54, %cst_3 [0] : vector<32x128xf32> to vector<128xf32>
    %56 = vector.shape_cast %55 : vector<128xf32> to vector<1x128xf32>
    %c0_4 = arith.constant 0 : index
    %c0_5 = arith.constant 0 : index
    %57 = memref.load %arg3[%c0_4, %c0_5] : memref<1x1xf32, #tpu.memory_space<smem>>
    %58 = vector.broadcast %57 : f32 to vector<1x128xf32>
    %59 = arith.addf %56, %58 : vector<1x128xf32>
    %c0_6 = arith.constant 0 : index
    %c0_7 = arith.constant 0 : index
    %60 = vector.load %arg4[%c0_6, %c0_7] : memref<1x128xf32, #tpu.memory_space<vmem>>, vector<1x128xf32>
    tpu.vector_store %arg4[%c0_6, %c0_7], %59 {strides = array<i32>} : memref<1x128xf32, #tpu.memory_space<vmem>>, vector<1x128xf32>,
    return
  }
  func.func @transform_0(%arg0: i32) -> (i32, i32) {
    %c0_i32 = arith.constant 0 : i32
    %c0_i32_0 = arith.constant 0 : i32
    return %c0_i32, %arg0 : i32, i32
  }
  func.func @transform_1(%arg0: i32) -> (i32, i32) {
    %c0_i32 = arith.constant 0 : i32
    %c0_i32_0 = arith.constant 0 : i32
    %c0_i32_1 = arith.constant 0 : i32
    return %c0_i32, %c0_i32_0 : i32, i32
  }
  func.func @transform_2(%arg0: i32) -> (i32, i32) {
    %c0_i32 = arith.constant 0 : i32
    %c0_i32_0 = arith.constant 0 : i32
    %c0_i32_1 = arith.constant 0 : i32
    return %c0_i32, %c0_i32_0 : i32, i32
  }
  func.func @transform_3(%arg0: i32) -> (i32, i32) {
    %c0_i32 = arith.constant 0 : i32
    %c0_i32_0 = arith.constant 0 : i32
    return %c0_i32, %arg0 : i32, i32
  }
}

</mosaic_0001>

<llo_original>
// kernel: tpu_custom_call.1
$region0: #{tpu_custom_call.1}
  #allocation0 [shape = 'u32[]', space=smem, size = 0x4, offset = 0x4, fixed_abs, tag = 'smem constant byte address 0x4 - core index']
  #allocation1 [shape = 'u32[144,128]{1,0:T(1,128)}', space=vmem, size = 0x12000, scoped, tag = 'internal scratch']
  #allocation2 [shape = 'f32[1,1]{1,0:T(1,128)S(6)}', space=smem, size = 0x200, scoped, tag = 'scoped memory for tpu_custom_call.1']
  %s0 = inlined_call_operand.vmem [shape: s8[8,128], index: 0, kind: input, shape index: {}]
  %s1 = inlined_call_operand.vmem [shape: f32[32,1], index: 1, kind: input, shape index: {}]
  %s2 = inlined_call_operand.<no memory space> [shape: f32[1,1], index: 2, kind: input, shape index: {}]
  %s3 = inlined_call_operand.hbm [shape: f32[1,128], index: 3, kind: output, shape index: {}]
  %s4 = sld [smem:[#allocation0]]
  $region22: #{tpu_custom_call.1} parent=0
    _
  %s6 = ssub.s32 1, %s4
  %s7 = scalar_select 0, %s6, %s4
  %8 = sst [smem:[#allocation2]] %s2
  $region1: #{tpu_custom_call.1} parent=0
    #allocation3 [shape = 'u8[512]{0}', space=vmem, size = 0x400, scoped, tag = 'output window, operand 0, single buffered']
    #allocation4 [shape = 's32[1]{0}', space=sflag, size = 0x4, scoped, tag = 'scoped memory for tpu_custom_call.1']
    %9 = vsyncpa [#allocation4], 0
    // Predicated region
    $region2: #{tpu_custom_call.1} parent=1 // pred_check
      _
    $region3: #{tpu_custom_call.1} parent=1 // pred_check_branch
      %11 = sbr.rel (0) target = $region5
    $region4: #{tpu_custom_call.1} parent=1 // pred_region
      _
    $region5: #{tpu_custom_call.1} parent=1 // pred_fallthru
      _
    // Predicated region
    $region6: #{tpu_custom_call.1} parent=1 // pred_check
      _
    $region7: #{tpu_custom_call.1} parent=1 // pred_check_branch
      %13 = sbr.rel (0) target = $region9
    $region8: #{tpu_custom_call.1} parent=1 // pred_region
      _
    $region9: #{tpu_custom_call.1} parent=1 // pred_fallthru
      _
    // Predicated region
    $region10: #{tpu_custom_call.1} parent=1 // pred_check
      _
    $region11: #{tpu_custom_call.1} parent=1 // pred_check_branch
      %15 = sbr.rel (0) target = $region13
    $region12: #{tpu_custom_call.1} parent=1 // pred_region
      _
    $region13: #{tpu_custom_call.1} parent=1 // pred_fallthru
      _
    %v16 = vld [vmem:[%s0] sm:$0x3]
    %v17 = vunpack.c.0.s8 %v16
    %v18 = vlaneseq
    %v19 = vshrl.u32 %v18, 7
    %v20 = vadd.s32 %v19, 8
    %v21 = vadd.s32 %v19, 16
    %v22 = vadd.s32 %v19, 24
    %v23 = vlaneseq
    %v24 = vshrl.u32 %v23, 7
    %v25 = vsub.s32 0, %v24
    %v26 = vrot.slane %v17, %v25
    %vm27 = vcmp.eq.s32.totalorder %v26, %v19
    %vm28 = vcmp.eq.s32.totalorder %v26, %v20
    %vm29 = vcmp.eq.s32.totalorder %v26, %v21
    %vm30 = vcmp.eq.s32.totalorder %v26, %v22
    %v31 = vsel %vm27, 1, 0
    %v32 = vsel %vm28, 1, 0
    %v33 = vsel %vm29, 1, 0
    %v34 = vsel %vm30, 1, 0
    %v35 = vcvt.s32.f32 %v31
    %v36 = vcvt.s32.f32 %v32
    %v37 = vcvt.s32.f32 %v33
    %v38 = vcvt.s32.f32 %v34
    %v39 = vadd.f32 %v35, 0.0
    %v40 = vadd.f32 %v36, 0.0
    %v41 = vadd.f32 %v37, 0.0
    %v42 = vadd.f32 %v38, 0.0
    %v43 = vlaneseq
    %v44 = vshrl.u32 %v43, 7
    %v45 = vsub.s32 1, %v44
    %v46 = vrot.slane %v17, %v45
    %vm47 = vcmp.eq.s32.totalorder %v46, %v19
    %vm48 = vcmp.eq.s32.totalorder %v46, %v20
    %vm49 = vcmp.eq.s32.totalorder %v46, %v21
    %vm50 = vcmp.eq.s32.totalorder %v46, %v22
    %v51 = vsel %vm47, 1, 0
    %v52 = vsel %vm48, 1, 0
    %v53 = vsel %vm49, 1, 0
    %v54 = vsel %vm50, 1, 0
    %v55 = vcvt.s32.f32 %v51
    %v56 = vcvt.s32.f32 %v52
    %v57 = vcvt.s32.f32 %v53
    %v58 = vcvt.s32.f32 %v54
    %v59 = vadd.f32 %v39, %v55
    %v60 = vadd.f32 %v40, %v56
    %v61 = vadd.f32 %v41, %v57
    %v62 = vadd.f32 %v42, %v58
    %v63 = vlaneseq
    %v64 = vshrl.u32 %v63, 7
    %v65 = vsub.s32 2, %v64
    %v66 = vrot.slane %v17, %v65
    %vm67 = vcmp.eq.s32.totalorder %v66, %v19
    %vm68 = vcmp.eq.s32.totalorder %v66, %v20
    %vm69 = vcmp.eq.s32.totalorder %v66, %v21
    %vm70 = vcmp.eq.s32.totalorder %v66, %v22
    %v71 = vsel %vm67, 1, 0
    %v72 = vsel %vm68, 1, 0
    %v73 = vsel %vm69, 1, 0
    %v74 = vsel %vm70, 1, 0
    %v75 = vcvt.s32.f32 %v71
    %v76 = vcvt.s32.f32 %v72
    %v77 = vcvt.s32.f32 %v73
    %v78 = vcvt.s32.f32 %v74
    %v79 = vadd.f32 %v59, %v75
    %v80 = vadd.f32 %v60, %v76
    %v81 = vadd.f32 %v61, %v77
    %v82 = vadd.f32 %v62, %v78
    %v83 = vlaneseq
    %v84 = vshrl.u32 %v83, 7
    %v85 = vsub.s32 3, %v84
    %v86 = vrot.slane %v17, %v85
    %vm87 = vcmp.eq.s32.totalorder %v86, %v19
    %vm88 = vcmp.eq.s32.totalorder %v86, %v20
    %vm89 = vcmp.eq.s32.totalorder %v86, %v21
    %vm90 = vcmp.eq.s32.totalorder %v86, %v22
    %v91 = vsel %vm87, 1, 0
    %v92 = vsel %vm88, 1, 0
    %v93 = vsel %vm89, 1, 0
    %v94 = vsel %vm90, 1, 0
    %v95 = vcvt.s32.f32 %v91
    %v96 = vcvt.s32.f32 %v92
    %v97 = vcvt.s32.f32 %v93
    %v98 = vcvt.s32.f32 %v94
    %v99 = vadd.f32 %v79, %v95
    %v100 = vadd.f32 %v80, %v96
    %v101 = vadd.f32 %v81, %v97
    %v102 = vadd.f32 %v82, %v98
    %v103 = vlaneseq
    %v104 = vshrl.u32 %v103, 7
    %v105 = vsub.s32 4, %v104
    %v106 = vrot.slane %v17, %v105
    %vm107 = vcmp.eq.s32.totalorder %v106, %v19
    %vm108 = vcmp.eq.s32.totalorder %v106, %v20
    %vm109 = vcmp.eq.s32.totalorder %v106, %v21
    %vm110 = vcmp.eq.s32.totalorder %v106, %v22
    %v111 = vsel %vm107, 1, 0
    %v112 = vsel %vm108, 1, 0
    %v113 = vsel %vm109, 1, 0
    %v114 = vsel %vm110, 1, 0
    %v115 = vcvt.s32.f32 %v111
    %v116 = vcvt.s32.f32 %v112
    %v117 = vcvt.s32.f32 %v113
    %v118 = vcvt.s32.f32 %v114
    %v119 = vadd.f32 %v99, %v115
    %v120 = vadd.f32 %v100, %v116
    %v121 = vadd.f32 %v101, %v117
    %v122 = vadd.f32 %v102, %v118
    %v123 = vlaneseq
    %v124 = vshrl.u32 %v123, 7
    %v125 = vsub.s32 5, %v124
    %v126 = vrot.slane %v17, %v125
    %vm127 = vcmp.eq.s32.totalorder %v126, %v19
    %vm128 = vcmp.eq.s32.totalorder %v126, %v20
    %vm129 = vcmp.eq.s32.totalorder %v126, %v21
    %vm130 = vcmp.eq.s32.totalorder %v126, %v22
    %v131 = vsel %vm127, 1, 0
    %v132 = vsel %vm128, 1, 0
    %v133 = vsel %vm129, 1, 0
    %v134 = vsel %vm130, 1, 0
    %v135 = vcvt.s32.f32 %v131
    %v136 = vcvt.s32.f32 %v132
    %v137 = vcvt.s32.f32 %v133
    %v138 = vcvt.s32.f32 %v134
    %v139 = vadd.f32 %v119, %v135
    %v140 = vadd.f32 %v120, %v136
    %v141 = vadd.f32 %v121, %v137
    %v142 = vadd.f32 %v122, %v138
    %v143 = vlaneseq
    %v144 = vshrl.u32 %v143, 7
    %v145 = vsub.s32 6, %v144
    %v146 = vrot.slane %v17, %v145
    %vm147 = vcmp.eq.s32.totalorder %v146, %v19
    %vm148 = vcmp.eq.s32.totalorder %v146, %v20
    %vm149 = vcmp.eq.s32.totalorder %v146, %v21
    %vm150 = vcmp.eq.s32.totalorder %v146, %v22
    %v151 = vsel %vm147, 1, 0
    %v152 = vsel %vm148, 1, 0
    %v153 = vsel %vm149, 1, 0
    %v154 = vsel %vm150, 1, 0
    %v155 = vcvt.s32.f32 %v151
    %v156 = vcvt.s32.f32 %v152
    %v157 = vcvt.s32.f32 %v153
    %v158 = vcvt.s32.f32 %v154
    %v159 = vadd.f32 %v139, %v155
    %v160 = vadd.f32 %v140, %v156
    %v161 = vadd.f32 %v141, %v157
    %v162 = vadd.f32 %v142, %v158
    %v163 = vlaneseq
    %v164 = vshrl.u32 %v163, 7
    %v165 = vsub.s32 7, %v164
    %v166 = vrot.slane %v17, %v165
    %vm167 = vcmp.eq.s32.totalorder %v166, %v19
    %vm168 = vcmp.eq.s32.totalorder %v166, %v20
    %vm169 = vcmp.eq.s32.totalorder %v166, %v21
    %vm170 = vcmp.eq.s32.totalorder %v166, %v22
    %v171 = vsel %vm167, 1, 0
    %v172 = vsel %vm168, 1, 0
    %v173 = vsel %vm169, 1, 0
    %v174 = vsel %vm170, 1, 0
    %v175 = vcvt.s32.f32 %v171
    %v176 = vcvt.s32.f32 %v172
    %v177 = vcvt.s32.f32 %v173
    %v178 = vcvt.s32.f32 %v174
    %v179 = vadd.f32 %v159, %v175
    %v180 = vadd.f32 %v160, %v176
    %v181 = vadd.f32 %v161, %v177
    %v182 = vadd.f32 %v162, %v178
    %v183 = vld [vmem:[%s1] sm:$0xff]
    %v184 = vld [vmem:[%s1 + $0x8] sm:$0xff]
    %v185 = vld [vmem:[%s1 + $0x10] sm:$0xff]
    %v186 = vld [vmem:[%s1 + $0x18] sm:$0xff]
    %188 = vset.pattern.permute.xlu0 0
    %189 = vperm.xlu0 %188, %v183
    %v190 = vpop.permute.xlu0 %189
    %193 = vset.pattern.permute.xlu0 0
    %194 = vperm.xlu0 %193, %v184
    %v195 = vpop.permute.xlu0 %194
    %198 = vset.pattern.permute.xlu0 0
    %199 = vperm.xlu0 %198, %v185
    %v200 = vpop.permute.xlu0 %199
    %203 = vset.pattern.permute.xlu0 0
    %204 = vperm.xlu0 %203, %v186
    %v205 = vpop.permute.xlu0 %204
    %v207 = vmul.f32 %v179, %v190
    %v208 = vmul.f32 %v180, %v195
    %v209 = vmul.f32 %v181, %v200
    %v210 = vmul.f32 %v182, %v205
    %v211 = vadd.f32 %v207, %v208
    %v212 = vadd.f32 %v211, %v209
    %v213 = vadd.f32 %v212, %v210
    %v214 = vrot.slane %v213, 4
    %v215 = vadd.f32 %v213, %v214
    %v216 = vrot.slane %v215, 2
    %v217 = vadd.f32 %v215, %v216
    %v218 = vrot.slane %v217, 1
    %v219 = vadd.f32 %v217, %v218
    %s220 = sld [smem:[#allocation2]]
    %v221 = vstv %s220
    %v222 = vadd.f32 %v219, %v221
    %223 = vst [vmem:[#allocation3] sm:$0x1] %v222
    // Predicated region
    $region14: #{tpu_custom_call.1} parent=1 // pred_check
      _
    $region15: #{tpu_custom_call.1} parent=1 // pred_check_branch
      %225 = sbr.rel (0) target = $region17
    $region16: #{tpu_custom_call.1} parent=1 // pred_region
      %s227 = ssub.s32 16, 16
      %228 = vsyncadd [#allocation4], %s227
      %s230 = sshll.u32 [#allocation3], 4
      %s231 = int_to_ptr.vmem [resolvable:$true] %s230
      %233 = dma.vmem_to_hbm [thread:$0]  %s231, 16, %s3, [#allocation4]
    $region17: #{tpu_custom_call.1} parent=1 // pred_fallthru
      _
    // Predicated region
    $region18: #{tpu_custom_call.1} parent=1 // pred_check
      _
    $region19: #{tpu_custom_call.1} parent=1 // pred_check_branch
      %235 = sbr.rel (0) target = $region21
    $region20: #{tpu_custom_call.1} parent=1 // pred_region
      %236 = dma.done [#allocation4], 16
    $region21: #{tpu_custom_call.1} parent=1 // pred_fallthru
      _
    %237 = vsyncpa [#allocation4], 1

</llo_original>
